<compile_context>
chip_gen: v5e
topology: v5e:2x2
jax: 0.10.0
libtpu: 0.0.40
codegen_flags: <defaults>
</compile_context>

<pallas_src>
import functools
import jax
import jax.numpy as jnp
from jax import lax
from jax.experimental import pallas as pl
from jax.experimental.pallas import tpu as pltpu

LN_EPS = 1e-5


def _layernorm(v, w, b):
    mu = jnp.mean(v, axis=-1, keepdims=True)
    var = jnp.mean((v - mu) ** 2, axis=-1, keepdims=True)
    return (v - mu) * lax.rsqrt(var + LN_EPS) * w + b


def block_kernel(x_ref, ln1w_ref, ln1b_ref, ln2w_ref, ln2b_ref,
                 wqkv_ref, wp_ref, bp_ref, w1_ref, b1_ref, w2_ref, b2_ref,
                 o_ref, sa_ref, *, n_heads):
    x = x_ref[0].astype(jnp.float32)                       # (T, E)
    T, E = x.shape
    hs = E // n_heads

    # ---- x = x + sa(ln1(x)) -------------------------------------------------
    h = _layernorm(x, ln1w_ref[0], ln1b_ref[0])

    # Fused QKV projection: one wide bf16 matmul, f32 accumulation.
    qkv = jnp.dot(h.astype(jnp.bfloat16), wqkv_ref[...],
                  preferred_element_type=jnp.float32)      # (T, 3E)
    scale = E ** (-0.5)                                    # PyTorch uses C = n_embeddings
    q = (qkv[:, :E] * scale).astype(jnp.bfloat16)          # scale folded into q
    k = qkv[:, E:2 * E].astype(jnp.bfloat16)
    v = qkv[:, 2 * E:].astype(jnp.bfloat16)

    row = lax.broadcasted_iota(jnp.int32, (T, T), 0)
    col = lax.broadcasted_iota(jnp.int32, (T, T), 1)
    causal = row >= col                                    # tril mask
    neg = jnp.float32(-1e30)

    for hd in range(n_heads):                              # static unroll, tiny head count
        lo, hi = hd * hs, (hd + 1) * hs
        s = lax.dot_general(q[:, lo:hi], k[:, lo:hi], (((1,), (1,)), ((), ())),
                            preferred_element_type=jnp.float32)          # (T, T)
        s = jnp.where(causal, s, neg)
        s = s - jnp.max(s, axis=-1, keepdims=True)
        p = jnp.exp(s)
        p = p * pl.reciprocal(jnp.sum(p, axis=-1, keepdims=True), approx=True)
        # write head output head-major into the (T, E) scratch (replaces concat)
        sa_ref[:, lo:hi] = jnp.dot(p.astype(jnp.bfloat16), v[:, lo:hi],
                                   preferred_element_type=jnp.float32)

    sa = jnp.dot(sa_ref[...].astype(jnp.bfloat16), wp_ref[...],
                 preferred_element_type=jnp.float32) + bp_ref[0]
    x1 = x + sa                                            # dropout == identity (eval)

    # ---- x = x + ffwd(ln2(x)) -----------------------------------------------
    h2 = _layernorm(x1, ln2w_ref[0], ln2b_ref[0])
    f = jnp.dot(h2.astype(jnp.bfloat16), w1_ref[...],
                preferred_element_type=jnp.float32) + b1_ref[0]
    f = jnp.maximum(f, 0.0)                                # ReLU
    f = jnp.dot(f.astype(jnp.bfloat16), w2_ref[...],
                preferred_element_type=jnp.float32) + b2_ref[0]
    o_ref[0] = (x1 + f).astype(o_ref.dtype)                # dropout == identity (eval)


def block_forward(x, params):
    B, T, E = x.shape
    n_heads = params["wq"].shape[0]

    # Fuse per-head (n_heads, E, hs) projection weights into one head-major (E, 3E)
    # bf16 matrix [Wq heads | Wk heads | Wv heads], matching torch.cat head order.
    def fuse(w):                                           # (nh, E, hs) -> (E, nh*hs)
        return jnp.transpose(w, (1, 0, 2)).reshape(E, E)

    wqkv = jnp.concatenate([fuse(params["wq"]), fuse(params["wk"]), fuse(params["wv"])],
                           axis=1).astype(jnp.bfloat16)    # (E, 3E)
    wp = params["wp"].astype(jnp.bfloat16)
    w1 = params["w1"].astype(jnp.bfloat16)
    w2 = params["w2"].astype(jnp.bfloat16)

    args = (params["ln1w"], params["ln1b"], params["ln2w"], params["ln2b"],
            wqkv, wp, params["bp"], w1, params["b1"], w2, params["b2"])
    full = lambda a: pl.BlockSpec(a.shape, lambda b: (0,) * a.ndim)

    kern = functools.partial(block_kernel, n_heads=n_heads)

    # TODO(synk): for production sizes (T~1-2k, E~768) add a query-tile grid axis with
    # flash-style K/V streaming and FFN k-tiling so the resident set fits v7x's 64 MiB VMEM.
    # TODO(synk): on 1-TC chips (v5e/v6e) block several sequences per grid step to
    # amortize the ~0.35us per-step overhead (kept at 1/step here so v7x's 2 cores split B=2).
    return pl.pallas_call(
        kern,
        out_shape=jax.ShapeDtypeStruct((B, T, E), x.dtype),
        grid=(B,),
        in_specs=[pl.BlockSpec((1, T, E), lambda b: (b, 0, 0))] + [full(a) for a in args],
        out_specs=pl.BlockSpec((1, T, E), lambda b: (b, 0, 0)),
        scratch_shapes=[pltpu.VMEM((T, E), jnp.float32)],
        compiler_params=pltpu.CompilerParams(dimension_semantics=("parallel",)),
    )(x, *args)


def make_params(key, n_embeddings, n_heads):
    E = n_embeddings
    hs = E // n_heads
    ks = jax.random.split(key, 8)
    s = 0.02
    return {
        # LayerNorm params (PyTorch default: weight=1, bias=0)
        "ln1w": jnp.ones((1, E), jnp.float32), "ln1b": jnp.zeros((1, E), jnp.float32),
        "ln2w": jnp.ones((1, E), jnp.float32), "ln2b": jnp.zeros((1, E), jnp.float32),
        # per-head K/Q/V weights (no bias), stored as (n_heads, E, head_size): q = x @ W
        "wq": s * jax.random.normal(ks[0], (n_heads, E, hs), jnp.float32),
        "wk": s * jax.random.normal(ks[1], (n_heads, E, hs), jnp.float32),
        "wv": s * jax.random.normal(ks[2], (n_heads, E, hs), jnp.float32),
        # output projection (E, E) + bias
        "wp": s * jax.random.normal(ks[3], (E, E), jnp.float32),
        "bp": s * jax.random.normal(ks[4], (1, E), jnp.float32),
        # feed-forward: (E, 4E) -> ReLU -> (4E, E)
        "w1": s * jax.random.normal(ks[5], (E, 4 * E), jnp.float32),
        "b1": s * jax.random.normal(ks[6], (1, 4 * E), jnp.float32),
        "w2": s * jax.random.normal(ks[7], (4 * E, E), jnp.float32),
        "b2": jnp.zeros((1, E), jnp.float32),
    }


def block_reference(x, params, matmul_dtype=jnp.float32):
    """Pure-JAX reference mirroring the PyTorch Block forward (eval mode).
    matmul_dtype=bfloat16 mirrors the kernel's MXU-native matmul numerics."""
    B, T, E = x.shape
    n_heads = params["wq"].shape[0]
    md = matmul_dtype

    def ln(v, w, b):
        mu = jnp.mean(v, axis=-1, keepdims=True)
        var = jnp.mean((v - mu) ** 2, axis=-1, keepdims=True)
        return (v - mu) * lax.rsqrt(var + LN_EPS) * w[0] + b[0]

    def mm(a, b):
        return jnp.dot(a.astype(md), b.astype(md), preferred_element_type=jnp.float32)

    h = ln(x, params["ln1w"], params["ln1b"])
    causal = jnp.tril(jnp.ones((T, T), bool))
    outs = []
    for hd in range(n_heads):
        q = mm(h, params["wq"][hd]) * (E ** -0.5)
        k = mm(h, params["wk"][hd])
        v = mm(h, params["wv"][hd])
        wei = jnp.einsum("btd,bsd->bts", q.astype(md), k.astype(md),
                         preferred_element_type=jnp.float32)
        wei = jnp.where(causal, wei, -jnp.inf)
        wei = jax.nn.softmax(wei, axis=-1)
        outs.append(jnp.einsum("bts,bsd->btd", wei.astype(md), v.astype(md),
                               preferred_element_type=jnp.float32))
    sa = mm(jnp.concatenate(outs, axis=-1), params["wp"]) + params["bp"][0]
    x1 = x + sa
    h2 = ln(x1, params["ln2w"], params["ln2b"])
    f = jnp.maximum(mm(h2, params["w1"]) + params["b1"][0], 0.0)
    f = mm(f, params["w2"]) + params["b2"][0]
    return x1 + f


if __name__ == "__main__":
    B, T, E, n_heads = 2, 8, 32, 4          # context_size = 8, n_embeddings = 32
    key = jax.random.PRNGKey(0)
    kx, kp = jax.random.split(key)
    x = jax.random.normal(kx, (B, T, E), jnp.float32)
    params = make_params(kp, E, n_heads)

    out = jax.block_until_ready(block_forward(x, params))
    ref_bf16 = jax.block_until_ready(block_reference(x, params, matmul_dtype=jnp.bfloat16))
    ref_f32 = jax.block_until_ready(block_reference(x, params, matmul_dtype=jnp.float32))

    assert out.shape == (B, T, E)
    # tight check vs a reference using the same bf16-matmul numerics as the kernel
    assert jnp.allclose(out, ref_bf16, atol=5e-3, rtol=5e-3), \
        float(jnp.max(jnp.abs(out - ref_bf16)))
    # loose check vs the pure-f32 (PyTorch-semantics) reference
    assert jnp.allclose(out, ref_f32, atol=3e-2, rtol=3e-2), \
        float(jnp.max(jnp.abs(out - ref_f32)))
    print("KERNEL_OK")
</pallas_src>

<mosaic_0001>
module attributes {stable_mosaic.version = 11 : i64} {
  func.func @block_kernel(%arg0: i32, %arg1: memref<1x8x32xf32, #tpu.memory_space<vmem>>, %arg2: memref<1x32xf32, #tpu.memory_space<vmem>>, %arg3: memref<1x32xf32, #tpu.memory_space<vmem>>, %arg4: memref<1x32xf32, #tpu.memory_space<vmem>>, %arg5: memref<1x32xf32, #tpu.memory_space<vmem>>, %arg6: memref<32x96xbf16, #tpu.memory_space<vmem>>, %arg7: memref<32x32xbf16, #tpu.memory_space<vmem>>, %arg8: memref<1x32xf32, #tpu.memory_space<vmem>>, %arg9: memref<32x128xbf16, #tpu.memory_space<vmem>>, %arg10: memref<1x128xf32, #tpu.memory_space<vmem>>, %arg11: memref<128x32xbf16, #tpu.memory_space<vmem>>, %arg12: memref<1x32xf32, #tpu.memory_space<vmem>>, %arg13: memref<1x8x32xf32, #tpu.memory_space<vmem>>, %arg14: memref<8x32xf32, #tpu.memory_space<vmem>>) attributes {dimension_semantics = [#tpu.dimension_semantics<parallel>], iteration_bounds = array<i64: 2>, scalar_prefetch = 0 : i64, scratch_operands = 1 : i64, tpu.core_type = #tpu.core_type<tc>, window_params = [{transform_indices = @transform_0, window_bounds = array<i64: 1, 8, 32>}, {pipeline_mode = #tpu.pipeline_mode<synchronous>, transform_indices = @transform_1, window_bounds = array<i64: 1, 32>}, {pipeline_mode = #tpu.pipeline_mode<synchronous>, transform_indices = @transform_2, window_bounds = array<i64: 1, 32>}, {pipeline_mode = #tpu.pipeline_mode<synchronous>, transform_indices = @transform_3, window_bounds = array<i64: 1, 32>}, {pipeline_mode = #tpu.pipeline_mode<synchronous>, transform_indices = @transform_4, window_bounds = array<i64: 1, 32>}, {pipeline_mode = #tpu.pipeline_mode<synchronous>, transform_indices = @transform_5, window_bounds = array<i64: 32, 96>}, {pipeline_mode = #tpu.pipeline_mode<synchronous>, transform_indices = @transform_6, window_bounds = array<i64: 32, 32>}, {pipeline_mode = #tpu.pipeline_mode<synchronous>, transform_indices = @transform_7, window_bounds = array<i64: 1, 32>}, {pipeline_mode = #tpu.pipeline_mode<synchronous>, transform_indices = @transform_8, window_bounds = array<i64: 32, 128>}, {pipeline_mode = #tpu.pipeline_mode<synchronous>, transform_indices = @transform_9, window_bounds = array<i64: 1, 128>}, {pipeline_mode = #tpu.pipeline_mode<synchronous>, transform_indices = @transform_10, window_bounds = array<i64: 128, 32>}, {pipeline_mode = #tpu.pipeline_mode<synchronous>, transform_indices = @transform_11, window_bounds = array<i64: 1, 32>}, {transform_indices = @transform_12, window_bounds = array<i64: 1, 8, 32>}]} {
    %c0 = arith.constant 0 : index
    %c0_0 = arith.constant 0 : index
    %c0_1 = arith.constant 0 : index
    %0 = vector.load %arg1[%c0, %c0_0, %c0_1] : memref<1x8x32xf32, #tpu.memory_space<vmem>>, vector<1x8x32xf32>
    %1 = vector.shape_cast %0 : vector<1x8x32xf32> to vector<8x32xf32>
    %c0_2 = arith.constant 0 : index
    %c0_3 = arith.constant 0 : index
    %2 = vector.load %arg2[%c0_2, %c0_3] : memref<1x32xf32, #tpu.memory_space<vmem>>, vector<1x32xf32>
    %3 = vector.shape_cast %2 : vector<1x32xf32> to vector<32xf32>
    %c0_4 = arith.constant 0 : index
    %c0_5 = arith.constant 0 : index
    %4 = vector.load %arg3[%c0_4, %c0_5] : memref<1x32xf32, #tpu.memory_space<vmem>>, vector<1x32xf32>
    %5 = vector.shape_cast %4 : vector<1x32xf32> to vector<32xf32>
    %cst = arith.constant dense<0.000000e+00> : vector<8xf32>
    %6 = vector.multi_reduction <add>, %1, %cst [1] : vector<8x32xf32> to vector<8xf32>
    %7 = vector.shape_cast %6 : vector<8xf32> to vector<8x1xf32>
    %cst_6 = arith.constant 3.200000e+01 : f32
    %8 = vector.broadcast %cst_6 : f32 to vector<8x1xf32>
    %9 = arith.divf %7, %8 : vector<8x1xf32>
    %10 = vector.broadcast %9 : vector<8x1xf32> to vector<8x32xf32>
    %11 = arith.subf %1, %10 : vector<8x32xf32>
    %12 = arith.mulf %11, %11 : vector<8x32xf32>
    %cst_7 = arith.constant dense<0.000000e+00> : vector<8xf32>
    %13 = vector.multi_reduction <add>, %12, %cst_7 [1] : vector<8x32xf32> to vector<8xf32>
    %14 = vector.shape_cast %13 : vector<8xf32> to vector<8x1xf32>
    %cst_8 = arith.constant 3.200000e+01 : f32
    %15 = vector.broadcast %cst_8 : f32 to vector<8x1xf32>
    %16 = arith.divf %14, %15 : vector<8x1xf32>
    %17 = vector.broadcast %9 : vector<8x1xf32> to vector<8x32xf32>
    %18 = arith.subf %1, %17 : vector<8x32xf32>
    %cst_9 = arith.constant 9.99999974E-6 : f32
    %19 = vector.broadcast %cst_9 : f32 to vector<8x1xf32>
    %20 = arith.addf %16, %19 : vector<8x1xf32>
    %21 = math.rsqrt %20 : vector<8x1xf32>
    %22 = vector.broadcast %21 : vector<8x1xf32> to vector<8x32xf32>
    %23 = arith.mulf %18, %22 : vector<8x32xf32>
    %24 = vector.shape_cast %3 : vector<32xf32> to vector<1x32xf32>
    %25 = vector.broadcast %24 : vector<1x32xf32> to vector<8x32xf32>
    %26 = arith.mulf %23, %25 : vector<8x32xf32>
    %27 = vector.shape_cast %5 : vector<32xf32> to vector<1x32xf32>
    %28 = vector.broadcast %27 : vector<1x32xf32> to vector<8x32xf32>
    %29 = arith.addf %26, %28 : vector<8x32xf32>
    %30 = arith.truncf %29 : vector<8x32xf32> to vector<8x32xbf16>
    %c0_10 = arith.constant 0 : index
    %c0_11 = arith.constant 0 : index
    %31 = vector.load %arg6[%c0_10, %c0_11] : memref<32x96xbf16, #tpu.memory_space<vmem>>, vector<32x96xbf16>
    %cst_12 = arith.constant dense<0.000000e+00> : vector<8x96xf32>
    %32 = tpu.matmul %30, %31, %cst_12 {dimension_numbers = #tpu.dot_dimension_numbers<[1], [0], [0], [1], [0, 0, 1, 1], [], []>} : vector<8x32xbf16>, vector<32x96xbf16>, vector<8x96xf32> -> vector<8x96xf32>
    %33 = vector.extract_strided_slice %32 {offsets = [0, 0], sizes = [8, 32], strides = [1, 1]} : vector<8x96xf32> to vector<8x32xf32>
    %cst_13 = arith.constant 0.176776692 : f32
    %34 = vector.broadcast %cst_13 : f32 to vector<8x32xf32>
    %35 = arith.mulf %33, %34 : vector<8x32xf32>
    %36 = arith.truncf %35 : vector<8x32xf32> to vector<8x32xbf16>
    %37 = vector.extract_strided_slice %32 {offsets = [0, 32], sizes = [8, 32], strides = [1, 1]} : vector<8x96xf32> to vector<8x32xf32>
    %38 = arith.truncf %37 : vector<8x32xf32> to vector<8x32xbf16>
    %39 = vector.extract_strided_slice %32 {offsets = [0, 64], sizes = [8, 32], strides = [1, 1]} : vector<8x96xf32> to vector<8x32xf32>
    %40 = arith.truncf %39 : vector<8x32xf32> to vector<8x32xbf16>
    %41 = tpu.iota {dimensions = array<i32: 0>} : vector<8x8xi32>
    %42 = tpu.iota {dimensions = array<i32: 1>} : vector<8x8xi32>
    %43 = arith.cmpi sge, %41, %42 : vector<8x8xi32>
    %44 = vector.extract_strided_slice %36 {offsets = [0, 0], sizes = [8, 8], strides = [1, 1]} : vector<8x32xbf16> to vector<8x8xbf16>
    %45 = vector.extract_strided_slice %38 {offsets = [0, 0], sizes = [8, 8], strides = [1, 1]} : vector<8x32xbf16> to vector<8x8xbf16>
    %cst_14 = arith.constant dense<0.000000e+00> : vector<8x8xf32>
    %46 = tpu.matmul %44, %45, %cst_14 {dimension_numbers = #tpu.dot_dimension_numbers<[1], [1], [0], [0], [0, 0, 1, 0], [], []>} : vector<8x8xbf16>, vector<8x8xbf16>, vector<8x8xf32> -> vector<8x8xf32>
    %cst_15 = arith.constant -1.000000e+30 : f32
    %47 = vector.broadcast %cst_15 : f32 to vector<8x8xf32>
    %48 = arith.select %43, %46, %47 : vector<8x8xi1>, vector<8x8xf32>
    %cst_16 = arith.constant dense<0xFF800000> : vector<8xf32>
    %49 = vector.multi_reduction <maximumf>, %48, %cst_16 [1] : vector<8x8xf32> to vector<8xf32>
    %50 = vector.shape_cast %49 : vector<8xf32> to vector<8x1xf32>
    %51 = vector.broadcast %50 : vector<8x1xf32> to vector<8x8xf32>
    %52 = arith.subf %48, %51 : vector<8x8xf32>
    %53 = math.exp %52 : vector<8x8xf32>
    %cst_17 = arith.constant dense<0.000000e+00> : vector<8xf32>
    %54 = vector.multi_reduction <add>, %53, %cst_17 [1] : vector<8x8xf32> to vector<8xf32>
    %55 = vector.shape_cast %54 : vector<8xf32> to vector<8x1xf32>
    %56 = tpu.reciprocal %55 {approx = true} : vector<8x1xf32> -> vector<8x1xf32>
    %57 = vector.broadcast %56 : vector<8x1xf32> to vector<8x8xf32>
    %58 = arith.mulf %53, %57 : vector<8x8xf32>
    %59 = arith.truncf %58 : vector<8x8xf32> to vector<8x8xbf16>
    %60 = vector.extract_strided_slice %40 {offsets = [0, 0], sizes = [8, 8], strides = [1, 1]} : vector<8x32xbf16> to vector<8x8xbf16>
    %cst_18 = arith.constant dense<0.000000e+00> : vector<8x8xf32>
    %61 = tpu.matmul %59, %60, %cst_18 {dimension_numbers = #tpu.dot_dimension_numbers<[1], [0], [0], [1], [0, 0, 1, 1], [], []>} : vector<8x8xbf16>, vector<8x8xbf16>, vector<8x8xf32> -> vector<8x8xf32>
    %c0_19 = arith.constant 0 : index
    %c0_20 = arith.constant 0 : index
    %62 = vector.load %arg14[%c0_19, %c0_20] : memref<8x32xf32, #tpu.memory_space<vmem>>, vector<8x8xf32>
    tpu.vector_store %arg14[%c0_19, %c0_20], %61 {strides = array<i32>} : memref<8x32xf32, #tpu.memory_space<vmem>>, vector<8x8xf32>,
    %63 = vector.extract_strided_slice %36 {offsets = [0, 8], sizes = [8, 8], strides = [1, 1]} : vector<8x32xbf16> to vector<8x8xbf16>
    %64 = vector.extract_strided_slice %38 {offsets = [0, 8], sizes = [8, 8], strides = [1, 1]} : vector<8x32xbf16> to vector<8x8xbf16>
    %cst_21 = arith.constant dense<0.000000e+00> : vector<8x8xf32>
    %65 = tpu.matmul %63, %64, %cst_21 {dimension_numbers = #tpu.dot_dimension_numbers<[1], [1], [0], [0], [0, 0, 1, 0], [], []>} : vector<8x8xbf16>, vector<8x8xbf16>, vector<8x8xf32> -> vector<8x8xf32>
    %cst_22 = arith.constant -1.000000e+30 : f32
    %66 = vector.broadcast %cst_22 : f32 to vector<8x8xf32>
    %67 = arith.select %43, %65, %66 : vector<8x8xi1>, vector<8x8xf32>
    %cst_23 = arith.constant dense<0xFF800000> : vector<8xf32>
    %68 = vector.multi_reduction <maximumf>, %67, %cst_23 [1] : vector<8x8xf32> to vector<8xf32>
    %69 = vector.shape_cast %68 : vector<8xf32> to vector<8x1xf32>
    %70 = vector.broadcast %69 : vector<8x1xf32> to vector<8x8xf32>
    %71 = arith.subf %67, %70 : vector<8x8xf32>
    %72 = math.exp %71 : vector<8x8xf32>
    %cst_24 = arith.constant dense<0.000000e+00> : vector<8xf32>
    %73 = vector.multi_reduction <add>, %72, %cst_24 [1] : vector<8x8xf32> to vector<8xf32>
    %74 = vector.shape_cast %73 : vector<8xf32> to vector<8x1xf32>
    %75 = tpu.reciprocal %74 {approx = true} : vector<8x1xf32> -> vector<8x1xf32>
    %76 = vector.broadcast %75 : vector<8x1xf32> to vector<8x8xf32>
    %77 = arith.mulf %72, %76 : vector<8x8xf32>
    %78 = arith.truncf %77 : vector<8x8xf32> to vector<8x8xbf16>
    %79 = vector.extract_strided_slice %40 {offsets = [0, 8], sizes = [8, 8], strides = [1, 1]} : vector<8x32xbf16> to vector<8x8xbf16>
    %cst_25 = arith.constant dense<0.000000e+00> : vector<8x8xf32>
    %80 = tpu.matmul %78, %79, %cst_25 {dimension_numbers = #tpu.dot_dimension_numbers<[1], [0], [0], [1], [0, 0, 1, 1], [], []>} : vector<8x8xbf16>, vector<8x8xbf16>, vector<8x8xf32> -> vector<8x8xf32>
    %c0_26 = arith.constant 0 : index
    %c8 = arith.constant 8 : index
    %81 = vector.load %arg14[%c0_26, %c8] : memref<8x32xf32, #tpu.memory_space<vmem>>, vector<8x8xf32>
    tpu.vector_store %arg14[%c0_26, %c8], %80 {strides = array<i32>} : memref<8x32xf32, #tpu.memory_space<vmem>>, vector<8x8xf32>,
    %82 = vector.extract_strided_slice %36 {offsets = [0, 16], sizes = [8, 8], strides = [1, 1]} : vector<8x32xbf16> to vector<8x8xbf16>
    %83 = vector.extract_strided_slice %38 {offsets = [0, 16], sizes = [8, 8], strides = [1, 1]} : vector<8x32xbf16> to vector<8x8xbf16>
    %cst_27 = arith.constant dense<0.000000e+00> : vector<8x8xf32>
    %84 = tpu.matmul %82, %83, %cst_27 {dimension_numbers = #tpu.dot_dimension_numbers<[1], [1], [0], [0], [0, 0, 1, 0], [], []>} : vector<8x8xbf16>, vector<8x8xbf16>, vector<8x8xf32> -> vector<8x8xf32>
    %cst_28 = arith.constant -1.000000e+30 : f32
    %85 = vector.broadcast %cst_28 : f32 to vector<8x8xf32>
    %86 = arith.select %43, %84, %85 : vector<8x8xi1>, vector<8x8xf32>
    %cst_29 = arith.constant dense<0xFF800000> : vector<8xf32>
    %87 = vector.multi_reduction <maximumf>, %86, %cst_29 [1] : vector<8x8xf32> to vector<8xf32>
    %88 = vector.shape_cast %87 : vector<8xf32> to vector<8x1xf32>
    %89 = vector.broadcast %88 : vector<8x1xf32> to vector<8x8xf32>
    %90 = arith.subf %86, %89 : vector<8x8xf32>
    %91 = math.exp %90 : vector<8x8xf32>
    %cst_30 = arith.constant dense<0.000000e+00> : vector<8xf32>
    %92 = vector.multi_reduction <add>, %91, %cst_30 [1] : vector<8x8xf32> to vector<8xf32>
    %93 = vector.shape_cast %92 : vector<8xf32> to vector<8x1xf32>
    %94 = tpu.reciprocal %93 {approx = true} : vector<8x1xf32> -> vector<8x1xf32>
    %95 = vector.broadcast %94 : vector<8x1xf32> to vector<8x8xf32>
    %96 = arith.mulf %91, %95 : vector<8x8xf32>
    %97 = arith.truncf %96 : vector<8x8xf32> to vector<8x8xbf16>
    %98 = vector.extract_strided_slice %40 {offsets = [0, 16], sizes = [8, 8], strides = [1, 1]} : vector<8x32xbf16> to vector<8x8xbf16>
    %cst_31 = arith.constant dense<0.000000e+00> : vector<8x8xf32>
    %99 = tpu.matmul %97, %98, %cst_31 {dimension_numbers = #tpu.dot_dimension_numbers<[1], [0], [0], [1], [0, 0, 1, 1], [], []>} : vector<8x8xbf16>, vector<8x8xbf16>, vector<8x8xf32> -> vector<8x8xf32>
    %c0_32 = arith.constant 0 : index
    %c16 = arith.constant 16 : index
    %100 = vector.load %arg14[%c0_32, %c16] : memref<8x32xf32, #tpu.memory_space<vmem>>, vector<8x8xf32>
    tpu.vector_store %arg14[%c0_32, %c16], %99 {strides = array<i32>} : memref<8x32xf32, #tpu.memory_space<vmem>>, vector<8x8xf32>,
    %101 = vector.extract_strided_slice %36 {offsets = [0, 24], sizes = [8, 8], strides = [1, 1]} : vector<8x32xbf16> to vector<8x8xbf16>
    %102 = vector.extract_strided_slice %38 {offsets = [0, 24], sizes = [8, 8], strides = [1, 1]} : vector<8x32xbf16> to vector<8x8xbf16>
    %cst_33 = arith.constant dense<0.000000e+00> : vector<8x8xf32>
    %103 = tpu.matmul %101, %102, %cst_33 {dimension_numbers = #tpu.dot_dimension_numbers<[1], [1], [0], [0], [0, 0, 1, 0], [], []>} : vector<8x8xbf16>, vector<8x8xbf16>, vector<8x8xf32> -> vector<8x8xf32>
    %cst_34 = arith.constant -1.000000e+30 : f32
    %104 = vector.broadcast %cst_34 : f32 to vector<8x8xf32>
    %105 = arith.select %43, %103, %104 : vector<8x8xi1>, vector<8x8xf32>
    %cst_35 = arith.constant dense<0xFF800000> : vector<8xf32>
    %106 = vector.multi_reduction <maximumf>, %105, %cst_35 [1] : vector<8x8xf32> to vector<8xf32>
    %107 = vector.shape_cast %106 : vector<8xf32> to vector<8x1xf32>
    %108 = vector.broadcast %107 : vector<8x1xf32> to vector<8x8xf32>
    %109 = arith.subf %105, %108 : vector<8x8xf32>
    %110 = math.exp %109 : vector<8x8xf32>
    %cst_36 = arith.constant dense<0.000000e+00> : vector<8xf32>
    %111 = vector.multi_reduction <add>, %110, %cst_36 [1] : vector<8x8xf32> to vector<8xf32>
    %112 = vector.shape_cast %111 : vector<8xf32> to vector<8x1xf32>
    %113 = tpu.reciprocal %112 {approx = true} : vector<8x1xf32> -> vector<8x1xf32>
    %114 = vector.broadcast %113 : vector<8x1xf32> to vector<8x8xf32>
    %115 = arith.mulf %110, %114 : vector<8x8xf32>
    %116 = arith.truncf %115 : vector<8x8xf32> to vector<8x8xbf16>
    %117 = vector.extract_strided_slice %40 {offsets = [0, 24], sizes = [8, 8], strides = [1, 1]} : vector<8x32xbf16> to vector<8x8xbf16>
    %cst_37 = arith.constant dense<0.000000e+00> : vector<8x8xf32>
    %118 = tpu.matmul %116, %117, %cst_37 {dimension_numbers = #tpu.dot_dimension_numbers<[1], [0], [0], [1], [0, 0, 1, 1], [], []>} : vector<8x8xbf16>, vector<8x8xbf16>, vector<8x8xf32> -> vector<8x8xf32>
    %c0_38 = arith.constant 0 : index
    %c24 = arith.constant 24 : index
    %119 = vector.load %arg14[%c0_38, %c24] : memref<8x32xf32, #tpu.memory_space<vmem>>, vector<8x8xf32>
    tpu.vector_store %arg14[%c0_38, %c24], %118 {strides = array<i32>} : memref<8x32xf32, #tpu.memory_space<vmem>>, vector<8x8xf32>,
    %c0_39 = arith.constant 0 : index
    %c0_40 = arith.constant 0 : index
    %120 = vector.load %arg14[%c0_39, %c0_40] : memref<8x32xf32, #tpu.memory_space<vmem>>, vector<8x32xf32>
    %121 = arith.truncf %120 : vector<8x32xf32> to vector<8x32xbf16>
    %c0_41 = arith.constant 0 : index
    %c0_42 = arith.constant 0 : index
    %122 = vector.load %arg7[%c0_41, %c0_42] : memref<32x32xbf16, #tpu.memory_space<vmem>>, vector<32x32xbf16>
    %cst_43 = arith.constant dense<0.000000e+00> : vector<8x32xf32>
    %123 = tpu.matmul %121, %122, %cst_43 {dimension_numbers = #tpu.dot_dimension_numbers<[1], [0], [0], [1], [0, 0, 1, 1], [], []>} : vector<8x32xbf16>, vector<32x32xbf16>, vector<8x32xf32> -> vector<8x32xf32>
    %c0_44 = arith.constant 0 : index
    %c0_45 = arith.constant 0 : index
    %124 = vector.load %arg8[%c0_44, %c0_45] : memref<1x32xf32, #tpu.memory_space<vmem>>, vector<1x32xf32>
    %125 = vector.shape_cast %124 : vector<1x32xf32> to vector<32xf32>
    %126 = vector.shape_cast %125 : vector<32xf32> to vector<1x32xf32>
    %127 = vector.broadcast %126 : vector<1x32xf32> to vector<8x32xf32>
    %128 = arith.addf %123, %127 : vector<8x32xf32>
    %129 = arith.addf %1, %128 : vector<8x32xf32>
    %c0_46 = arith.constant 0 : index
    %c0_47 = arith.constant 0 : index
    %130 = vector.load %arg4[%c0_46, %c0_47] : memref<1x32xf32, #tpu.memory_space<vmem>>, vector<1x32xf32>
    %131 = vector.shape_cast %130 : vector<1x32xf32> to vector<32xf32>
    %c0_48 = arith.constant 0 : index
    %c0_49 = arith.constant 0 : index
    %132 = vector.load %arg5[%c0_48, %c0_49] : memref<1x32xf32, #tpu.memory_space<vmem>>, vector<1x32xf32>
    %133 = vector.shape_cast %132 : vector<1x32xf32> to vector<32xf32>
    %cst_50 = arith.constant dense<0.000000e+00> : vector<8xf32>
    %134 = vector.multi_reduction <add>, %129, %cst_50 [1] : vector<8x32xf32> to vector<8xf32>
    %135 = vector.shape_cast %134 : vector<8xf32> to vector<8x1xf32>
    %cst_51 = arith.constant 3.200000e+01 : f32
    %136 = vector.broadcast %cst_51 : f32 to vector<8x1xf32>
    %137 = arith.divf %135, %136 : vector<8x1xf32>
    %138 = vector.broadcast %137 : vector<8x1xf32> to vector<8x32xf32>
    %139 = arith.subf %129, %138 : vector<8x32xf32>
    %140 = arith.mulf %139, %139 : vector<8x32xf32>
    %cst_52 = arith.constant dense<0.000000e+00> : vector<8xf32>
    %141 = vector.multi_reduction <add>, %140, %cst_52 [1] : vector<8x32xf32> to vector<8xf32>
    %142 = vector.shape_cast %141 : vector<8xf32> to vector<8x1xf32>
    %cst_53 = arith.constant 3.200000e+01 : f32
    %143 = vector.broadcast %cst_53 : f32 to vector<8x1xf32>
    %144 = arith.divf %142, %143 : vector<8x1xf32>
    %145 = vector.broadcast %137 : vector<8x1xf32> to vector<8x32xf32>
    %146 = arith.subf %129, %145 : vector<8x32xf32>
    %cst_54 = arith.constant 9.99999974E-6 : f32
    %147 = vector.broadcast %cst_54 : f32 to vector<8x1xf32>
    %148 = arith.addf %144, %147 : vector<8x1xf32>
    %149 = math.rsqrt %148 : vector<8x1xf32>
    %150 = vector.broadcast %149 : vector<8x1xf32> to vector<8x32xf32>
    %151 = arith.mulf %146, %150 : vector<8x32xf32>
    %152 = vector.shape_cast %131 : vector<32xf32> to vector<1x32xf32>
    %153 = vector.broadcast %152 : vector<1x32xf32> to vector<8x32xf32>
    %154 = arith.mulf %151, %153 : vector<8x32xf32>
    %155 = vector.shape_cast %133 : vector<32xf32> to vector<1x32xf32>
    %156 = vector.broadcast %155 : vector<1x32xf32> to vector<8x32xf32>
    %157 = arith.addf %154, %156 : vector<8x32xf32>
    %158 = arith.truncf %157 : vector<8x32xf32> to vector<8x32xbf16>
    %c0_55 = arith.constant 0 : index
    %c0_56 = arith.constant 0 : index
    %159 = vector.load %arg9[%c0_55, %c0_56] : memref<32x128xbf16, #tpu.memory_space<vmem>>, vector<32x128xbf16>
    %cst_57 = arith.constant dense<0.000000e+00> : vector<8x128xf32>
    %160 = tpu.matmul %158, %159, %cst_57 {dimension_numbers = #tpu.dot_dimension_numbers<[1], [0], [0], [1], [0, 0, 1, 1], [], []>} : vector<8x32xbf16>, vector<32x128xbf16>, vector<8x128xf32> -> vector<8x128xf32>
    %c0_58 = arith.constant 0 : index
    %c0_59 = arith.constant 0 : index
    %161 = vector.load %arg10[%c0_58, %c0_59] : memref<1x128xf32, #tpu.memory_space<vmem>>, vector<1x128xf32>
    %162 = vector.shape_cast %161 : vector<1x128xf32> to vector<128xf32>
    %163 = vector.shape_cast %162 : vector<128xf32> to vector<1x128xf32>
    %164 = vector.broadcast %163 : vector<1x128xf32> to vector<8x128xf32>
    %165 = arith.addf %160, %164 : vector<8x128xf32>
    %cst_60 = arith.constant 0.000000e+00 : f32
    %166 = vector.broadcast %cst_60 : f32 to vector<8x128xf32>
    %167 = arith.maximumf %165, %166 : vector<8x128xf32>
    %168 = arith.truncf %167 : vector<8x128xf32> to vector<8x128xbf16>
    %c0_61 = arith.constant 0 : index
    %c0_62 = arith.constant 0 : index
    %169 = vector.load %arg11[%c0_61, %c0_62] : memref<128x32xbf16, #tpu.memory_space<vmem>>, vector<128x32xbf16>
    %cst_63 = arith.constant dense<0.000000e+00> : vector<8x32xf32>
    %170 = tpu.matmul %168, %169, %cst_63 {dimension_numbers = #tpu.dot_dimension_numbers<[1], [0], [0], [1], [0, 0, 1, 1], [], []>} : vector<8x128xbf16>, vector<128x32xbf16>, vector<8x32xf32> -> vector<8x32xf32>
    %c0_64 = arith.constant 0 : index
    %c0_65 = arith.constant 0 : index
    %171 = vector.load %arg12[%c0_64, %c0_65] : memref<1x32xf32, #tpu.memory_space<vmem>>, vector<1x32xf32>
    %172 = vector.shape_cast %171 : vector<1x32xf32> to vector<32xf32>
    %173 = vector.shape_cast %172 : vector<32xf32> to vector<1x32xf32>
    %174 = vector.broadcast %173 : vector<1x32xf32> to vector<8x32xf32>
    %175 = arith.addf %170, %174 : vector<8x32xf32>
    %176 = arith.addf %129, %175 : vector<8x32xf32>
    %c0_66 = arith.constant 0 : index
    %c0_67 = arith.constant 0 : index
    %c0_68 = arith.constant 0 : index
    %177 = vector.load %arg13[%c0_66, %c0_67, %c0_68] : memref<1x8x32xf32, #tpu.memory_space<vmem>>, vector<1x8x32xf32>
    %178 = vector.shape_cast %177 : vector<1x8x32xf32> to vector<8x32xf32>
    %179 = vector.shape_cast %176 : vector<8x32xf32> to vector<1x8x32xf32>
    tpu.vector_store %arg13[%c0_66, %c0_67, %c0_68], %179 {strides = array<i32>} : memref<1x8x32xf32, #tpu.memory_space<vmem>>, vector<1x8x32xf32>,
    return
  }
  func.func @transform_0(%arg0: i32) -> (i32, i32, i32) {
    %c0_i32 = arith.constant 0 : i32
    %c0_i32_0 = arith.constant 0 : i32
    %c0_i32_1 = arith.constant 0 : i32
    return %arg0, %c0_i32, %c0_i32_0 : i32, i32, i32
  }
  func.func @transform_1(%arg0: i32) -> (i32, i32) {
    %c0_i32 = arith.constant 0 : i32
    %c0_i32_0 = arith.constant 0 : i32
    %c0_i32_1 = arith.constant 0 : i32
    return %c0_i32, %c0_i32_0 : i32, i32
  }
  func.func @transform_2(%arg0: i32) -> (i32, i32) {
    %c0_i32 = arith.constant 0 : i32
    %c0_i32_0 = arith.constant 0 : i32
    %c0_i32_1 = arith.constant 0 : i32
    return %c0_i32, %c0_i32_0 : i32, i32
  }
  func.func @transform_3(%arg0: i32) -> (i32, i32) {
    %c0_i32 = arith.constant 0 : i32
    %c0_i32_0 = arith.constant 0 : i32
    %c0_i32_1 = arith.constant 0 : i32
    return %c0_i32, %c0_i32_0 : i32, i32
  }
  func.func @transform_4(%arg0: i32) -> (i32, i32) {
    %c0_i32 = arith.constant 0 : i32
    %c0_i32_0 = arith.constant 0 : i32
    %c0_i32_1 = arith.constant 0 : i32
    return %c0_i32, %c0_i32_0 : i32, i32
  }
  func.func @transform_5(%arg0: i32) -> (i32, i32) {
    %c0_i32 = arith.constant 0 : i32
    %c0_i32_0 = arith.constant 0 : i32
    %c0_i32_1 = arith.constant 0 : i32
    return %c0_i32, %c0_i32_0 : i32, i32
  }
  func.func @transform_6(%arg0: i32) -> (i32, i32) {
    %c0_i32 = arith.constant 0 : i32
    %c0_i32_0 = arith.constant 0 : i32
    %c0_i32_1 = arith.constant 0 : i32
    return %c0_i32, %c0_i32_0 : i32, i32
  }
  func.func @transform_7(%arg0: i32) -> (i32, i32) {
    %c0_i32 = arith.constant 0 : i32
    %c0_i32_0 = arith.constant 0 : i32
    %c0_i32_1 = arith.constant 0 : i32
    return %c0_i32, %c0_i32_0 : i32, i32
  }
  func.func @transform_8(%arg0: i32) -> (i32, i32) {
    %c0_i32 = arith.constant 0 : i32
    %c0_i32_0 = arith.constant 0 : i32
    %c0_i32_1 = arith.constant 0 : i32
    return %c0_i32, %c0_i32_0 : i32, i32
  }
  func.func @transform_9(%arg0: i32) -> (i32, i32) {
    %c0_i32 = arith.constant 0 : i32
    %c0_i32_0 = arith.constant 0 : i32
    %c0_i32_1 = arith.constant 0 : i32
    return %c0_i32, %c0_i32_0 : i32, i32
  }
  func.func @transform_10(%arg0: i32) -> (i32, i32) {
    %c0_i32 = arith.constant 0 : i32
    %c0_i32_0 = arith.constant 0 : i32
    %c0_i32_1 = arith.constant 0 : i32
    return %c0_i32, %c0_i32_0 : i32, i32
  }
  func.func @transform_11(%arg0: i32) -> (i32, i32) {
    %c0_i32 = arith.constant 0 : i32
    %c0_i32_0 = arith.constant 0 : i32
    %c0_i32_1 = arith.constant 0 : i32
    return %c0_i32, %c0_i32_0 : i32, i32
  }
  func.func @transform_12(%arg0: i32) -> (i32, i32, i32) {
    %c0_i32 = arith.constant 0 : i32
    %c0_i32_0 = arith.constant 0 : i32
    %c0_i32_1 = arith.constant 0 : i32
    return %arg0, %c0_i32, %c0_i32_0 : i32, i32, i32
  }
}

</mosaic_0001>

<llo_original>
// kernel: tpu_custom_call.1
$region0: #{tpu_custom_call.1}
  #allocation0 [shape = 'u32[]', space=smem, size = 0x4, offset = 0x4, fixed_abs, tag = 'smem constant byte address 0x4 - core index']
  #allocation1 [shape = 'u32[72,128]{1,0:T(1,128)}', space=vmem, size = 0x9000, scoped, tag = 'internal scratch']
  #allocation2 [shape = 'f32[8,32]{1,0:T(8,128)}', space=vmem, size = 0x1000, scoped, tag = 'scratch operand']
  %s0 = inlined_call_operand.vmem [shape: f32[2,8,32], index: 0, kind: input, shape index: {}]
  %s1 = inlined_call_operand.vmem [shape: f32[1,32], index: 1, kind: input, shape index: {}]
  %s2 = inlined_call_operand.vmem [shape: f32[1,32], index: 2, kind: input, shape index: {}]
  %s3 = inlined_call_operand.vmem [shape: f32[1,32], index: 3, kind: input, shape index: {}]
  %s4 = inlined_call_operand.vmem [shape: f32[1,32], index: 4, kind: input, shape index: {}]
  %s5 = inlined_call_operand.vmem [shape: bf16[32,96], index: 5, kind: input, shape index: {}]
  %s6 = inlined_call_operand.vmem [shape: bf16[32,32], index: 6, kind: input, shape index: {}]
  %s7 = inlined_call_operand.vmem [shape: f32[1,32], index: 7, kind: input, shape index: {}]
  %s8 = inlined_call_operand.vmem [shape: bf16[32,128], index: 8, kind: input, shape index: {}]
  %s9 = inlined_call_operand.vmem [shape: f32[1,128], index: 9, kind: input, shape index: {}]
  %s10 = inlined_call_operand.vmem [shape: bf16[128,32], index: 10, kind: input, shape index: {}]
  %s11 = inlined_call_operand.vmem [shape: f32[1,32], index: 11, kind: input, shape index: {}]
  %s12 = inlined_call_operand.hbm [shape: f32[2,8,32], index: 12, kind: output, shape index: {}]
  %s13 = sld [smem:[#allocation0]]
  $region81: #{tpu_custom_call.1} parent=0
    _
  %s15 = ssub.s32 1, %s13
  %s16 = scalar_select 0, %s15, %s13
  $region1: #{tpu_custom_call.1} parent=0
    #allocation3 [shape = 'u8[8192]{0}', space=vmem, size = 0x2000, scoped, tag = 'output window, operand 0']
    #allocation4 [shape = 's32[2]{0}', space=sflag, size = 0x8, scoped, tag = 'scoped memory for tpu_custom_call.1']
    %17 = vsyncpa [#allocation4], 0
    %s18 = scalar_lea.sflag [#allocation4], 1
    %19 = vsyncpa %s18, 0
    loop: start=0, step=1, limit=4
    $region2: #{tpu_custom_call.1} parent=1 // loop_pre_header
      _
    $region3: #{tpu_custom_call.1} parent=1 // loop_header
      %s21 = sphi 0, %s25
      %p22 = scmp.ge.s32.totalorder %s21, 4
      %s31 = sphi 0, %s33
      %s34 = sphi 0, %s31
      %s35 = sphi 0, %s34
      %s51 = sphi 0, %s35
      %s55 = sphi 0, %s55
      %s57 = sphi 0, %s55
      %s58 = sphi 0, %s57
      %s72 = sphi 0, %s58
      %s76 = sphi 0, %s76
      %s78 = sphi 0, %s76
      %s79 = sphi 0, %s78
      %s93 = sphi 0, %s79
      %s97 = sphi 0, %s97
      %s99 = sphi 0, %s97
      %s100 = sphi 0, %s99
      %s114 = sphi 0, %s100
      %s118 = sphi 0, %s118
      %s120 = sphi 0, %s118
      %s121 = sphi 0, %s120
      %s135 = sphi 0, %s121
      %s139 = sphi 0, %s139
      %s141 = sphi 0, %s139
      %s142 = sphi 0, %s141
      %s156 = sphi 0, %s142
      %s160 = sphi 0, %s160
      %s162 = sphi 0, %s160
      %s163 = sphi 0, %s162
      %s177 = sphi 0, %s163
      %s181 = sphi 0, %s181
      %s183 = sphi 0, %s181
      %s184 = sphi 0, %s183
      %s198 = sphi 0, %s184
      %s202 = sphi 0, %s202
      %s204 = sphi 0, %s202
      %s205 = sphi 0, %s204
      %s219 = sphi 0, %s205
      %s223 = sphi 0, %s223
      %s225 = sphi 0, %s223
      %s226 = sphi 0, %s225
      %s240 = sphi 0, %s226
      %s244 = sphi 0, %s244
      %s246 = sphi 0, %s244
      %s247 = sphi 0, %s246
      %s261 = sphi 0, %s247
      %s265 = sphi 0, %s265
      %s267 = sphi 0, %s265
      %s268 = sphi 0, %s267
      %s282 = sphi 0, %s268
      %s288 = sphi 0, %s290
      %s291 = sphi 0, %s288
      %s292 = sphi 0, %s291
      %s308 = sphi 0, %s292
    $region4: #{tpu_custom_call.1} parent=1 // loop_header_branch
      %24 = sbr.rel (%p22) target = $region8
    $region5: #{tpu_custom_call.1} parent=1 // loop_body
      %s26 = ssub.s32 %s21, 1
      %s27 = ssub.s32 %s21, 2
      %s28 = sadd.s32 %s21, 1
      %s29 = ssub.s32 %s21, %s28
      %p30 = scmp.eq.s32.totalorder %s29, 0
      %s32 = sadd.s32 %s31, 1
      %s33 = scalar_select %p30, %s31, %s32
      %p36 = pneg %p30
      %p37 = scmp.eq.s32.totalorder %s21, 1
      %p38 = por %p36, %p37
      %p39 = scmp.ne.s32.totalorder %s31, %s34
      %p40 = scmp.eq.s32.totalorder %s21, 0
      %p41 = por %p39, %p40
      %p42 = scmp.ne.s32.totalorder %s31, %s34
      %p43 = scmp.eq.s32.totalorder %s26, 1
      %p44 = por %p42, %p43
      %p45 = scmp.ne.s32.totalorder %s34, %s35
      %p46 = scmp.eq.s32.totalorder %s26, 0
      %p47 = por %p45, %p46
      %p48 = scmp.ne.s32.totalorder %s34, %s35
      %p49 = scmp.eq.s32.totalorder %s27, 1
      %p50 = por %p48, %p49
      %p52 = scmp.ne.s32.totalorder %s35, %s51
      %p53 = scmp.eq.s32.totalorder %s27, 0
      %p54 = por %p52, %p53
      %s56 = sadd.s32 %s55, 1
      %p59 = scmp.eq.s32.totalorder %s21, 1
      %p60 = scmp.ne.s32.totalorder %s55, %s57
      %p61 = scmp.eq.s32.totalorder %s21, 0
      %p62 = por %p60, %p61
      %p63 = scmp.ne.s32.totalorder %s55, %s57
      %p64 = scmp.eq.s32.totalorder %s26, 1
      %p65 = por %p63, %p64
      %p66 = scmp.ne.s32.totalorder %s57, %s58
      %p67 = scmp.eq.s32.totalorder %s26, 0
      %p68 = por %p66, %p67
      %p69 = scmp.ne.s32.totalorder %s57, %s58
      %p70 = scmp.eq.s32.totalorder %s27, 1
      %p71 = por %p69, %p70
      %p73 = scmp.ne.s32.totalorder %s58, %s72
      %p74 = scmp.eq.s32.totalorder %s27, 0
      %p75 = por %p73, %p74
      %s77 = sadd.s32 %s76, 1
      %p80 = scmp.eq.s32.totalorder %s21, 1
      %p81 = scmp.ne.s32.totalorder %s76, %s78
      %p82 = scmp.eq.s32.totalorder %s21, 0
      %p83 = por %p81, %p82
      %p84 = scmp.ne.s32.totalorder %s76, %s78
      %p85 = scmp.eq.s32.totalorder %s26, 1
      %p86 = por %p84, %p85
      %p87 = scmp.ne.s32.totalorder %s78, %s79
      %p88 = scmp.eq.s32.totalorder %s26, 0
      %p89 = por %p87, %p88
      %p90 = scmp.ne.s32.totalorder %s78, %s79
      %p91 = scmp.eq.s32.totalorder %s27, 1
      %p92 = por %p90, %p91
      %p94 = scmp.ne.s32.totalorder %s79, %s93
      %p95 = scmp.eq.s32.totalorder %s27, 0
      %p96 = por %p94, %p95
      %s98 = sadd.s32 %s97, 1
      %p101 = scmp.eq.s32.totalorder %s21, 1
      %p102 = scmp.ne.s32.totalorder %s97, %s99
      %p103 = scmp.eq.s32.totalorder %s21, 0
      %p104 = por %p102, %p103
      %p105 = scmp.ne.s32.totalorder %s97, %s99
      %p106 = scmp.eq.s32.totalorder %s26, 1
      %p107 = por %p105, %p106
      %p108 = scmp.ne.s32.totalorder %s99, %s100
      %p109 = scmp.eq.s32.totalorder %s26, 0
      %p110 = por %p108, %p109
      %p111 = scmp.ne.s32.totalorder %s99, %s100
      %p112 = scmp.eq.s32.totalorder %s27, 1
      %p113 = por %p111, %p112
      %p115 = scmp.ne.s32.totalorder %s100, %s114
      %p116 = scmp.eq.s32.totalorder %s27, 0
      %p117 = por %p115, %p116
      %s119 = sadd.s32 %s118, 1
      %p122 = scmp.eq.s32.totalorder %s21, 1
      %p123 = scmp.ne.s32.totalorder %s118, %s120
      %p124 = scmp.eq.s32.totalorder %s21, 0
      %p125 = por %p123, %p124
      %p126 = scmp.ne.s32.totalorder %s118, %s120
      %p127 = scmp.eq.s32.totalorder %s26, 1
      %p128 = por %p126, %p127
      %p129 = scmp.ne.s32.totalorder %s120, %s121
      %p130 = scmp.eq.s32.totalorder %s26, 0
      %p131 = por %p129, %p130
      %p132 = scmp.ne.s32.totalorder %s120, %s121
      %p133 = scmp.eq.s32.totalorder %s27, 1
      %p134 = por %p132, %p133
      %p136 = scmp.ne.s32.totalorder %s121, %s135
      %p137 = scmp.eq.s32.totalorder %s27, 0
      %p138 = por %p136, %p137
      %s140 = sadd.s32 %s139, 1
      %p143 = scmp.eq.s32.totalorder %s21, 1
      %p144 = scmp.ne.s32.totalorder %s139, %s141
      %p145 = scmp.eq.s32.totalorder %s21, 0
      %p146 = por %p144, %p145
      %p147 = scmp.ne.s32.totalorder %s139, %s141
      %p148 = scmp.eq.s32.totalorder %s26, 1
      %p149 = por %p147, %p148
      %p150 = scmp.ne.s32.totalorder %s141, %s142
      %p151 = scmp.eq.s32.totalorder %s26, 0
      %p152 = por %p150, %p151
      %p153 = scmp.ne.s32.totalorder %s141, %s142
      %p154 = scmp.eq.s32.totalorder %s27, 1
      %p155 = por %p153, %p154
      %p157 = scmp.ne.s32.totalorder %s142, %s156
      %p158 = scmp.eq.s32.totalorder %s27, 0
      %p159 = por %p157, %p158
      %s161 = sadd.s32 %s160, 1
      %p164 = scmp.eq.s32.totalorder %s21, 1
      %p165 = scmp.ne.s32.totalorder %s160, %s162
      %p166 = scmp.eq.s32.totalorder %s21, 0
      %p167 = por %p165, %p166
      %p168 = scmp.ne.s32.totalorder %s160, %s162
      %p169 = scmp.eq.s32.totalorder %s26, 1
      %p170 = por %p168, %p169
      %p171 = scmp.ne.s32.totalorder %s162, %s163
      %p172 = scmp.eq.s32.totalorder %s26, 0
      %p173 = por %p171, %p172
      %p174 = scmp.ne.s32.totalorder %s162, %s163
      %p175 = scmp.eq.s32.totalorder %s27, 1
      %p176 = por %p174, %p175
      %p178 = scmp.ne.s32.totalorder %s163, %s177
      %p179 = scmp.eq.s32.totalorder %s27, 0
      %p180 = por %p178, %p179
      %s182 = sadd.s32 %s181, 1
      %p185 = scmp.eq.s32.totalorder %s21, 1
      %p186 = scmp.ne.s32.totalorder %s181, %s183
      %p187 = scmp.eq.s32.totalorder %s21, 0
      %p188 = por %p186, %p187
      %p189 = scmp.ne.s32.totalorder %s181, %s183
      %p190 = scmp.eq.s32.totalorder %s26, 1
      %p191 = por %p189, %p190
      %p192 = scmp.ne.s32.totalorder %s183, %s184
      %p193 = scmp.eq.s32.totalorder %s26, 0
      %p194 = por %p192, %p193
      %p195 = scmp.ne.s32.totalorder %s183, %s184
      %p196 = scmp.eq.s32.totalorder %s27, 1
      %p197 = por %p195, %p196
      %p199 = scmp.ne.s32.totalorder %s184, %s198
      %p200 = scmp.eq.s32.totalorder %s27, 0
      %p201 = por %p199, %p200
      %s203 = sadd.s32 %s202, 1
      %p206 = scmp.eq.s32.totalorder %s21, 1
      %p207 = scmp.ne.s32.totalorder %s202, %s204
      %p208 = scmp.eq.s32.totalorder %s21, 0
      %p209 = por %p207, %p208
      %p210 = scmp.ne.s32.totalorder %s202, %s204
      %p211 = scmp.eq.s32.totalorder %s26, 1
      %p212 = por %p210, %p211
      %p213 = scmp.ne.s32.totalorder %s204, %s205
      %p214 = scmp.eq.s32.totalorder %s26, 0
      %p215 = por %p213, %p214
      %p216 = scmp.ne.s32.totalorder %s204, %s205
      %p217 = scmp.eq.s32.totalorder %s27, 1
      %p218 = por %p216, %p217
      %p220 = scmp.ne.s32.totalorder %s205, %s219
      %p221 = scmp.eq.s32.totalorder %s27, 0
      %p222 = por %p220, %p221
      %s224 = sadd.s32 %s223, 1
      %p227 = scmp.eq.s32.totalorder %s21, 1
      %p228 = scmp.ne.s32.totalorder %s223, %s225
      %p229 = scmp.eq.s32.totalorder %s21, 0
      %p230 = por %p228, %p229
      %p231 = scmp.ne.s32.totalorder %s223, %s225
      %p232 = scmp.eq.s32.totalorder %s26, 1
      %p233 = por %p231, %p232
      %p234 = scmp.ne.s32.totalorder %s225, %s226
      %p235 = scmp.eq.s32.totalorder %s26, 0
      %p236 = por %p234, %p235
      %p237 = scmp.ne.s32.totalorder %s225, %s226
      %p238 = scmp.eq.s32.totalorder %s27, 1
      %p239 = por %p237, %p238
      %p241 = scmp.ne.s32.totalorder %s226, %s240
      %p242 = scmp.eq.s32.totalorder %s27, 0
      %p243 = por %p241, %p242
      %s245 = sadd.s32 %s244, 1
      %p248 = scmp.eq.s32.totalorder %s21, 1
      %p249 = scmp.ne.s32.totalorder %s244, %s246
      %p250 = scmp.eq.s32.totalorder %s21, 0
      %p251 = por %p249, %p250
      %p252 = scmp.ne.s32.totalorder %s244, %s246
      %p253 = scmp.eq.s32.totalorder %s26, 1
      %p254 = por %p252, %p253
      %p255 = scmp.ne.s32.totalorder %s246, %s247
      %p256 = scmp.eq.s32.totalorder %s26, 0
      %p257 = por %p255, %p256
      %p258 = scmp.ne.s32.totalorder %s246, %s247
      %p259 = scmp.eq.s32.totalorder %s27, 1
      %p260 = por %p258, %p259
      %p262 = scmp.ne.s32.totalorder %s247, %s261
      %p263 = scmp.eq.s32.totalorder %s27, 0
      %p264 = por %p262, %p263
      %s266 = sadd.s32 %s265, 1
      %p269 = scmp.eq.s32.totalorder %s21, 1
      %p270 = scmp.ne.s32.totalorder %s265, %s267
      %p271 = scmp.eq.s32.totalorder %s21, 0
      %p272 = por %p270, %p271
      %p273 = scmp.ne.s32.totalorder %s265, %s267
      %p274 = scmp.eq.s32.totalorder %s26, 1
      %p275 = por %p273, %p274
      %p276 = scmp.ne.s32.totalorder %s267, %s268
      %p277 = scmp.eq.s32.totalorder %s26, 0
      %p278 = por %p276, %p277
      %p279 = scmp.ne.s32.totalorder %s267, %s268
      %p280 = scmp.eq.s32.totalorder %s27, 1
      %p281 = por %p279, %p280
      %p283 = scmp.ne.s32.totalorder %s268, %s282
      %p284 = scmp.eq.s32.totalorder %s27, 0
      %p285 = por %p283, %p284
      %s286 = ssub.s32 %s21, %s28
      %p287 = scmp.eq.s32.totalorder %s286, 0
      %s289 = sadd.s32 %s288, 1
      %s290 = scalar_select %p287, %s288, %s289
      %p293 = pneg %p287
      %p294 = scmp.eq.s32.totalorder %s21, 1
      %p295 = por %p293, %p294
      %p296 = scmp.ne.s32.totalorder %s288, %s291
      %p297 = scmp.eq.s32.totalorder %s21, 0
      %p298 = por %p296, %p297
      %p299 = scmp.ne.s32.totalorder %s288, %s291
      %p300 = scmp.eq.s32.totalorder %s26, 1
      %p301 = por %p299, %p300
      %p302 = scmp.ne.s32.totalorder %s291, %s292
      %p303 = scmp.eq.s32.totalorder %s26, 0
      %p304 = por %p302, %p303
      %p305 = scmp.ne.s32.totalorder %s291, %s292
      %p306 = scmp.eq.s32.totalorder %s27, 1
      %p307 = por %p305, %p306
      %p309 = scmp.ne.s32.totalorder %s292, %s308
      %p310 = scmp.eq.s32.totalorder %s27, 0
      %p311 = por %p309, %p310
      %p312 = scmp.le.s32.totalorder 1, %s21
      %p313 = scmp.lt.s32.totalorder %s21, 3
      %p314 = pnand %p312, %p313
      %p315 = pneg %p314
      // Predicated region
      $region9: #{tpu_custom_call.1} parent=5 // pred_check
        _
      $region10: #{tpu_custom_call.1} parent=5 // pred_check_branch
        %317 = sbr.rel (%p314) target = $region12
      $region11: #{tpu_custom_call.1} parent=5 // pred_region
        %s318 = ssub.s32 %s21, 1
        // Predicated region
        $region13: #{tpu_custom_call.1} parent=11 // pred_check
          %p319 = pneg %p68
        $region14: #{tpu_custom_call.1} parent=11 // pred_check_branch
          %321 = sbr.rel (%p319) target = $region16
        $region15: #{tpu_custom_call.1} parent=11 // pred_region
          _
        $region16: #{tpu_custom_call.1} parent=11 // pred_fallthru
          _
        // Predicated region
        $region17: #{tpu_custom_call.1} parent=11 // pred_check
          %p322 = pneg %p89
        $region18: #{tpu_custom_call.1} parent=11 // pred_check_branch
          %324 = sbr.rel (%p322) target = $region20
        $region19: #{tpu_custom_call.1} parent=11 // pred_region
          _
        $region20: #{tpu_custom_call.1} parent=11 // pred_fallthru
          _
        // Predicated region
        $region21: #{tpu_custom_call.1} parent=11 // pred_check
          %p325 = pneg %p110
        $region22: #{tpu_custom_call.1} parent=11 // pred_check_branch
          %327 = sbr.rel (%p325) target = $region24
        $region23: #{tpu_custom_call.1} parent=11 // pred_region
          _
        $region24: #{tpu_custom_call.1} parent=11 // pred_fallthru
          _
        // Predicated region
        $region25: #{tpu_custom_call.1} parent=11 // pred_check
          %p328 = pneg %p131
        $region26: #{tpu_custom_call.1} parent=11 // pred_check_branch
          %330 = sbr.rel (%p328) target = $region28
        $region27: #{tpu_custom_call.1} parent=11 // pred_region
          _
        $region28: #{tpu_custom_call.1} parent=11 // pred_fallthru
          _
        // Predicated region
        $region29: #{tpu_custom_call.1} parent=11 // pred_check
          %p331 = pneg %p152
        $region30: #{tpu_custom_call.1} parent=11 // pred_check_branch
          %333 = sbr.rel (%p331) target = $region32
        $region31: #{tpu_custom_call.1} parent=11 // pred_region
          _
        $region32: #{tpu_custom_call.1} parent=11 // pred_fallthru
          _
        // Predicated region
        $region33: #{tpu_custom_call.1} parent=11 // pred_check
          %p334 = pneg %p173
        $region34: #{tpu_custom_call.1} parent=11 // pred_check_branch
          %336 = sbr.rel (%p334) target = $region36
        $region35: #{tpu_custom_call.1} parent=11 // pred_region
          _
        $region36: #{tpu_custom_call.1} parent=11 // pred_fallthru
          _
        // Predicated region
        $region37: #{tpu_custom_call.1} parent=11 // pred_check
          %p337 = pneg %p194
        $region38: #{tpu_custom_call.1} parent=11 // pred_check_branch
          %339 = sbr.rel (%p337) target = $region40
        $region39: #{tpu_custom_call.1} parent=11 // pred_region
          _
        $region40: #{tpu_custom_call.1} parent=11 // pred_fallthru
          _
        // Predicated region
        $region41: #{tpu_custom_call.1} parent=11 // pred_check
          %p340 = pneg %p215
        $region42: #{tpu_custom_call.1} parent=11 // pred_check_branch
          %342 = sbr.rel (%p340) target = $region44
        $region43: #{tpu_custom_call.1} parent=11 // pred_region
          _
        $region44: #{tpu_custom_call.1} parent=11 // pred_fallthru
          _
        // Predicated region
        $region45: #{tpu_custom_call.1} parent=11 // pred_check
          %p343 = pneg %p236
        $region46: #{tpu_custom_call.1} parent=11 // pred_check_branch
          %345 = sbr.rel (%p343) target = $region48
        $region47: #{tpu_custom_call.1} parent=11 // pred_region
          _
        $region48: #{tpu_custom_call.1} parent=11 // pred_fallthru
          _
        // Predicated region
        $region49: #{tpu_custom_call.1} parent=11 // pred_check
          %p346 = pneg %p257
        $region50: #{tpu_custom_call.1} parent=11 // pred_check_branch
          %348 = sbr.rel (%p346) target = $region52
        $region51: #{tpu_custom_call.1} parent=11 // pred_region
          _
        $region52: #{tpu_custom_call.1} parent=11 // pred_fallthru
          _
        // Predicated region
        $region53: #{tpu_custom_call.1} parent=11 // pred_check
          %p349 = pneg %p278
        $region54: #{tpu_custom_call.1} parent=11 // pred_check_branch
          %351 = sbr.rel (%p349) target = $region56
        $region55: #{tpu_custom_call.1} parent=11 // pred_region
          _
        $region56: #{tpu_custom_call.1} parent=11 // pred_fallthru
          _
      $region12: #{tpu_custom_call.1} parent=5 // pred_fallthru
        _
      %p352 = scmp.lt.s32.totalorder %s21, 2
      // Predicated region
      $region57: #{tpu_custom_call.1} parent=5 // pred_check
        %p353 = pneg %p352
      $region58: #{tpu_custom_call.1} parent=5 // pred_check_branch
        %355 = sbr.rel (%p353) target = $region60
      $region59: #{tpu_custom_call.1} parent=5 // pred_region
        // Predicated region
        $region61: #{tpu_custom_call.1} parent=59 // pred_check
          %p356 = pneg %p41
        $region62: #{tpu_custom_call.1} parent=59 // pred_check_branch
          %358 = sbr.rel (%p356) target = $region64
        $region63: #{tpu_custom_call.1} parent=59 // pred_region
          %p359 = scmp.lt.s32.totalorder %s21, 1
          %s360 = scalar_select %p359, %s21, 1
          %s361 = smul.addr %s360, 8
          %s362 = scalar_lea.vmem %s0, %s361
        $region64: #{tpu_custom_call.1} parent=59 // pred_fallthru
          _
      $region60: #{tpu_custom_call.1} parent=5 // pred_fallthru
        _
      %p363 = scmp.le.s32.totalorder 1, %s21
      %p364 = scmp.lt.s32.totalorder %s21, 3
      %p365 = pnand %p363, %p364
      %p366 = pneg %p365
      // Predicated region
      $region65: #{tpu_custom_call.1} parent=5 // pred_check
        _
      $region66: #{tpu_custom_call.1} parent=5 // pred_check_branch
        %368 = sbr.rel (%p365) target = $region68
      $region67: #{tpu_custom_call.1} parent=5 // pred_region
        %s369 = ssub.s32 %s21, 1
        %p370 = scmp.lt.s32.totalorder %s26, 1
        %s371 = scalar_select %p370, %s26, 1
        %s372 = smul.addr %s371, 8
        %s373 = scalar_lea.vmem %s0, %s372
        %p374 = pneg %p47
        %p375 = pneg %p44
        %p376 = pneg %p68
        %p377 = pneg %p65
        %p378 = pneg %p89
        %p379 = pneg %p86
        %p380 = pneg %p110
        %p381 = pneg %p107
        %p382 = pneg %p131
        %p383 = pneg %p128
        %p384 = pneg %p152
        %p385 = pneg %p149
        %p386 = pneg %p173
        %p387 = pneg %p170
        %p388 = pneg %p194
        %p389 = pneg %p191
        %p390 = pneg %p215
        %p391 = pneg %p212
        %p392 = pneg %p236
        %p393 = pneg %p233
        %p394 = pneg %p257
        %p395 = pneg %p254
        %p396 = pneg %p278
        %p397 = pneg %p275
        %p398 = pneg %p304
        %p399 = pneg %p301
        %s400 = sand.u32 %s291, 1
        %s401 = scalar_lea.sflag [#allocation4], %s400
        %s402 = sand.u32 %s291, 1
        %s403 = smul.addr %s402, 8
        %s404 = scalar_lea.vmem [#allocation3], %s403
        %p405 = scmp.lt.s32.totalorder %s26, 1
        %s406 = scalar_select %p405, %s26, 1
        %s407 = smul.addr %s406, 8
        %s408 = scalar_lea.vmem %s0, %s407
        %v410 = vld [vmem:[%s408] sm:$0xff]
        %v411 = vld [vmem:[%s1] sm:$0x1]
        %v412 = vld [vmem:[%s2] sm:$0x1]
        %vm413 = vcmask 261120
        %v414 = vsel %vm413, %v410, 0.0
        %415 = vadd.xlane.f32.xlu0 %v414
        %v416 = vpop.xlane.xlu0 %415
        %v417 = vrcp.pop 32.0
        %v418 = vmul.f32 32.0, %v417
        %v419 = vsub.f32 1.0, %v418
        %v420 = vmul.f32 %v417, %v419
        %v421 = vadd.f32 %v417, %v420
        %vm422 = vweird.f32 %v417
        %v423 = vsel %vm422, %v417, %v421
        %v424 = vmul.f32 %v416, %v423
        %v425 = vsub.f32 %v410, %v424
        %v426 = vmul.f32 %v425, %v425
        %v427 = vsel %vm413, %v426, 0.0
        %428 = vadd.xlane.f32.xlu0 %v427
        %v429 = vpop.xlane.xlu0 %428
        %v430 = vmul.f32 %v429, %v423
        %v431 = vadd.f32 %v430, 1e-05
        %v432 = vrsqrt.pop %v431
        %v433 = vmul.f32 %v432, %v431
        %v434 = vmul.f32 %v433, %v432
        %v435 = vmul.f32 0.5, %v434
        %v436 = vsub.f32 1.5, %v435
        %v437 = vmul.f32 %v432, %v436
        %vm438 = vweird.f32 %v431
        %vm439 = vweird.f32 %v432
        %vm440 = vmor %vm438, %vm439
        %v441 = vsel %vm440, %v432, %v437
        %v442 = vmul.f32 %v425, %v441
        %v444 = vperm.slane %v411, 0
        %v446 = vmul.f32 %v442, %v444
        %v448 = vperm.slane %v412, 0
        %v450 = vadd.f32 %v446, %v448
        %v451 = vpack.c.bf16 %v450, %v450
        %v452 = vld [vmem:[%s5] sm:$0xf]
        %v453 = vld [vmem:[%s5 + $0x4] sm:$0xf]
        %v454 = vld [vmem:[%s5 + $0x8] sm:$0xf]
        %v455 = vld [vmem:[%s5 + $0xc] sm:$0xf]
        %v460 = vunpack.c.l.b16 %v452
        %v461 = vunpack.c.l.b16 %v453
        %v462 = vunpack.c.l.b16 %v454
        %v463 = vunpack.c.l.b16 %v455
        %v464 = vpack.c.b16 %v461, %v460
        %v465 = vpack.c.b16 %v463, %v462
        %v469 = vsel %vm413, %v451, 0
        %471 = vmatpush.bf16.msra.mxu0 0
        %472 = vmatpush.bf16.msra.mxu0 0
        %473 = vmatpush.bf16.msra.mxu0 0
        %474 = vmatpush.bf16.msra.mxu0 0
        %475 = vmatpush.bf16.msra.mxu0 0
        %476 = vmatpush.bf16.msra.mxu0 0
        %477 = vmatpush.bf16.msra.mxu0 %v465
        %478 = vmatpush.bf16.msra.mxu0 %v464
        %479 = vmatmul.bf16.gmra.mxu0 %v469
        %v480 = vpop.f32.mrf.mxu0
        %v481 = vadd.f32 0.0, %v480
        %v482 = vpop.f32.mrf.mxu0
        %483 = vdwg.mxu0
        %v484 = vmul.f32 %v481, 0.17677669
        %v485 = vpack.c.bf16 %v484, %v484
        %v486 = vpack.c.bf16 %v481, %v481
        %v487 = vlaneseq
        %v488 = vshrl.u32 %v487, 7
        %v489 = vlaneseq
        %v490 = vand.u32 %v489, 127
        %vm491 = vcmp.ge.s32.totalorder %v488, %v490
        %v493 = vunpack.c.l.b16 %v486
        %v494 = vpack.c.b16 %v493, %v493
        %495 = vrot.lane.b32.xlu0 %v494, 96
        %v496 = vpop.permute.xlu0 %495
        %vm497 = vcmask 64512
        %v499 = vsel %vm497, %v485, 0
        %v502 = vsel %vm497, %v496, 0
        %504 = vmatpush.bf16.xpose.msra.mxu0 0
        %505 = vmatpush.bf16.xpose.msra.mxu0 0
        %506 = vmatpush.bf16.xpose.msra.mxu0 0
        %507 = vmatpush.bf16.xpose.msra.mxu0 0
        %508 = vmatpush.bf16.xpose.msra.mxu0 0
        %509 = vmatpush.bf16.xpose.msra.mxu0 0
        %510 = vmatpush.bf16.xpose.msra.mxu0 0
        %511 = vmatpush.bf16.xpose.msra.mxu0 %v502
        %512 = vmatmul.bf16.gmra.mxu0 %v499
        %v513 = vpop.f32.mrf.mxu0
        %v514 = vadd.f32 0.0, %v513
        %v515 = vpop.f32.mrf.mxu0
        %516 = vdwg.mxu0
        %v517 = vsel %vm491, %v514, -1e+30
        %v518 = vsel %vm497, %v517, -inf
        %519 = vmax.xlane.f32.xlu0 %v518
        %v520 = vpop.xlane.xlu0 %519
        %v521 = vsub.f32 %v517, %v520
        %v522 = vmul.f32 %v521, 1.442695
        %v523 = vpow.pop %v522
        %v524 = vsel %vm497, %v523, 0.0
        %525 = vadd.xlane.f32.xlu0 %v524
        %v526 = vpop.xlane.xlu0 %525
        %v527 = vrcp.pop %v526
        %v528 = vmul.f32 %v523, %v527
        %v529 = vpack.c.bf16 %v528, %v528
        %530 = vrot.lane.b32.xlu0 %v494, 64
        %v531 = vpop.permute.xlu0 %530
        %v533 = vsel %vm497, %v529, 0
        %vm535 = vcmask 1043456
        %v537 = vsel %vm535, %v531, 0
        %539 = vmatpush.bf16.msra.mxu0 0
        %540 = vmatpush.bf16.msra.mxu0 0
        %541 = vmatpush.bf16.msra.mxu0 0
        %542 = vmatpush.bf16.msra.mxu0 0
        %543 = vmatpush.bf16.msra.mxu0 0
        %544 = vmatpush.bf16.msra.mxu0 0
        %545 = vmatpush.bf16.msra.mxu0 0
        %546 = vmatpush.bf16.msra.mxu0 %v537
        %547 = vmatmul.bf16.gmra.mxu0 %v533
        %v548 = vpop.f32.mrf.mxu0
        %v549 = vadd.f32 0.0, %v548
        %v550 = vpop.f32.mrf.mxu0
        %551 = vdwg.mxu0
        %552 = vst.msk [vmem:[#allocation2] sm:$0xff] %vm497, %v549
        %v554 = vunpack.c.l.b16 %v485
        %v555 = vpack.c.b16 %v554, %v554
        %556 = vrot.lane.b32.xlu0 %v555, 120
        %v557 = vpop.permute.xlu0 %556
        %558 = vrot.lane.b32.xlu0 %v494, 88
        %v559 = vpop.permute.xlu0 %558
        %v561 = vsel %vm497, %v557, 0
        %v564 = vsel %vm497, %v559, 0
        %566 = vmatpush.bf16.xpose.msra.mxu0 0
        %567 = vmatpush.bf16.xpose.msra.mxu0 0
        %568 = vmatpush.bf16.xpose.msra.mxu0 0
        %569 = vmatpush.bf16.xpose.msra.mxu0 0
        %570 = vmatpush.bf16.xpose.msra.mxu0 0
        %571 = vmatpush.bf16.xpose.msra.mxu0 0
        %572 = vmatpush.bf16.xpose.msra.mxu0 0
        %573 = vmatpush.bf16.xpose.msra.mxu0 %v564
        %574 = vmatmul.bf16.gmra.mxu0 %v561
        %v575 = vpop.f32.mrf.mxu0
        %v576 = vadd.f32 0.0, %v575
        %v577 = vpop.f32.mrf.mxu0
        %578 = vdwg.mxu0
        %v579 = vsel %vm491, %v576, -1e+30
        %v580 = vsel %vm497, %v579, -inf
        %581 = vmax.xlane.f32.xlu0 %v580
        %v582 = vpop.xlane.xlu0 %581
        %v583 = vsub.f32 %v579, %v582
        %v584 = vmul.f32 %v583, 1.442695
        %v585 = vpow.pop %v584
        %v586 = vsel %vm497, %v585, 0.0
        %587 = vadd.xlane.f32.xlu0 %v586
        %v588 = vpop.xlane.xlu0 %587
        %v589 = vrcp.pop %v588
        %v590 = vmul.f32 %v585, %v589
        %v591 = vpack.c.bf16 %v590, %v590
        %592 = vrot.lane.b32.xlu0 %v494, 56
        %v593 = vpop.permute.xlu0 %592
        %v595 = vsel %vm497, %v591, 0
        %v598 = vsel %vm535, %v593, 0
        %600 = vmatpush.bf16.msra.mxu0 0
        %601 = vmatpush.bf16.msra.mxu0 0
        %602 = vmatpush.bf16.msra.mxu0 0
        %603 = vmatpush.bf16.msra.mxu0 0
        %604 = vmatpush.bf16.msra.mxu0 0
        %605 = vmatpush.bf16.msra.mxu0 0
        %606 = vmatpush.bf16.msra.mxu0 0
        %607 = vmatpush.bf16.msra.mxu0 %v598
        %608 = vmatmul.bf16.gmra.mxu0 %v595
        %v609 = vpop.f32.mrf.mxu0
        %v610 = vadd.f32 0.0, %v609
        %v611 = vpop.f32.mrf.mxu0
        %612 = vdwg.mxu0
        %614 = vrot.lane.b32.xlu0 %v610, 8
        %v615 = vpop.permute.xlu0 %614
        %vm617 = vcmask 130112
        %618 = vst.msk [vmem:[#allocation2] sm:$0xff] %vm617, %v615
        %619 = vrot.lane.b32.xlu0 %v555, 112
        %v620 = vpop.permute.xlu0 %619
        %621 = vrot.lane.b32.xlu0 %v494, 80
        %v622 = vpop.permute.xlu0 %621
        %v624 = vsel %vm497, %v620, 0
        %v627 = vsel %vm497, %v622, 0
        %629 = vmatpush.bf16.xpose.msra.mxu0 0
        %630 = vmatpush.bf16.xpose.msra.mxu0 0
        %631 = vmatpush.bf16.xpose.msra.mxu0 0
        %632 = vmatpush.bf16.xpose.msra.mxu0 0
        %633 = vmatpush.bf16.xpose.msra.mxu0 0
        %634 = vmatpush.bf16.xpose.msra.mxu0 0
        %635 = vmatpush.bf16.xpose.msra.mxu0 0
        %636 = vmatpush.bf16.xpose.msra.mxu0 %v627
        %637 = vmatmul.bf16.gmra.mxu0 %v624
        %v638 = vpop.f32.mrf.mxu0
        %v639 = vadd.f32 0.0, %v638
        %v640 = vpop.f32.mrf.mxu0
        %641 = vdwg.mxu0
        %v642 = vsel %vm491, %v639, -1e+30
        %v643 = vsel %vm497, %v642, -inf
        %644 = vmax.xlane.f32.xlu0 %v643
        %v645 = vpop.xlane.xlu0 %644
        %v646 = vsub.f32 %v642, %v645
        %v647 = vmul.f32 %v646, 1.442695
        %v648 = vpow.pop %v647
        %v649 = vsel %vm497, %v648, 0.0
        %650 = vadd.xlane.f32.xlu0 %v649
        %v651 = vpop.xlane.xlu0 %650
        %v652 = vrcp.pop %v651
        %v653 = vmul.f32 %v648, %v652
        %v654 = vpack.c.bf16 %v653, %v653
        %655 = vrot.lane.b32.xlu0 %v494, 48
        %v656 = vpop.permute.xlu0 %655
        %v658 = vsel %vm497, %v654, 0
        %v661 = vsel %vm535, %v656, 0
        %663 = vmatpush.bf16.msra.mxu0 0
        %664 = vmatpush.bf16.msra.mxu0 0
        %665 = vmatpush.bf16.msra.mxu0 0
        %666 = vmatpush.bf16.msra.mxu0 0
        %667 = vmatpush.bf16.msra.mxu0 0
        %668 = vmatpush.bf16.msra.mxu0 0
        %669 = vmatpush.bf16.msra.mxu0 0
        %670 = vmatpush.bf16.msra.mxu0 %v661
        %671 = vmatmul.bf16.gmra.mxu0 %v658
        %v672 = vpop.f32.mrf.mxu0
        %v673 = vadd.f32 0.0, %v672
        %v674 = vpop.f32.mrf.mxu0
        %675 = vdwg.mxu0
        %677 = vrot.lane.b32.xlu0 %v673, 16
        %v678 = vpop.permute.xlu0 %677
        %vm680 = vcmask 195712
        %681 = vst.msk [vmem:[#allocation2] sm:$0xff] %vm680, %v678
        %682 = vrot.lane.b32.xlu0 %v555, 104
        %v683 = vpop.permute.xlu0 %682
        %684 = vrot.lane.b32.xlu0 %v494, 72
        %v685 = vpop.permute.xlu0 %684
        %v687 = vsel %vm497, %v683, 0
        %v690 = vsel %vm497, %v685, 0
        %692 = vmatpush.bf16.xpose.msra.mxu0 0
        %693 = vmatpush.bf16.xpose.msra.mxu0 0
        %694 = vmatpush.bf16.xpose.msra.mxu0 0
        %695 = vmatpush.bf16.xpose.msra.mxu0 0
        %696 = vmatpush.bf16.xpose.msra.mxu0 0
        %697 = vmatpush.bf16.xpose.msra.mxu0 0
        %698 = vmatpush.bf16.xpose.msra.mxu0 0
        %699 = vmatpush.bf16.xpose.msra.mxu0 %v690
        %700 = vmatmul.bf16.gmra.mxu0 %v687
        %v701 = vpop.f32.mrf.mxu0
        %v702 = vadd.f32 0.0, %v701
        %v703 = vpop.f32.mrf.mxu0
        %704 = vdwg.mxu0
        %v705 = vsel %vm491, %v702, -1e+30
        %v706 = vsel %vm497, %v705, -inf
        %707 = vmax.xlane.f32.xlu0 %v706
        %v708 = vpop.xlane.xlu0 %707
        %v709 = vsub.f32 %v705, %v708
        %v710 = vmul.f32 %v709, 1.442695
        %v711 = vpow.pop %v710
        %v712 = vsel %vm497, %v711, 0.0
        %713 = vadd.xlane.f32.xlu0 %v712
        %v714 = vpop.xlane.xlu0 %713
        %v715 = vrcp.pop %v714
        %v716 = vmul.f32 %v711, %v715
        %v717 = vpack.c.bf16 %v716, %v716
        %718 = vrot.lane.b32.xlu0 %v494, 40
        %v719 = vpop.permute.xlu0 %718
        %v721 = vsel %vm497, %v717, 0
        %v724 = vsel %vm535, %v719, 0
        %726 = vmatpush.bf16.msra.mxu0 0
        %727 = vmatpush.bf16.msra.mxu0 0
        %728 = vmatpush.bf16.msra.mxu0 0
        %729 = vmatpush.bf16.msra.mxu0 0
        %730 = vmatpush.bf16.msra.mxu0 0
        %731 = vmatpush.bf16.msra.mxu0 0
        %732 = vmatpush.bf16.msra.mxu0 0
        %733 = vmatpush.bf16.msra.mxu0 %v724
        %734 = vmatmul.bf16.gmra.mxu0 %v721
        %v735 = vpop.f32.mrf.mxu0
        %v736 = vadd.f32 0.0, %v735
        %v737 = vpop.f32.mrf.mxu0
        %738 = vdwg.mxu0
        %740 = vrot.lane.b32.xlu0 %v736, 24
        %v741 = vpop.permute.xlu0 %740
        %vm743 = vcmask 261312
        %744 = vst.msk [vmem:[#allocation2] sm:$0xff] %vm743, %v741
        %v745 = vld [vmem:[#allocation2] sm:$0xff]
        %v746 = vpack.c.bf16 %v745, %v745
        %v747 = vld [vmem:[%s6] sm:$0xf]
        %v748 = vld [vmem:[%s6 + $0x4] sm:$0xf]
        %v749 = vld [vmem:[%s6 + $0x8] sm:$0xf]
        %v750 = vld [vmem:[%s6 + $0xc] sm:$0xf]
        %v751 = vld [vmem:[%s7] sm:$0x1]
        %v753 = vperm.slane %v751, 0
        %v759 = vunpack.c.l.b16 %v747
        %v760 = vunpack.c.l.b16 %v748
        %v761 = vunpack.c.l.b16 %v749
        %v762 = vunpack.c.l.b16 %v750
        %v763 = vpack.c.b16 %v760, %v759
        %v764 = vpack.c.b16 %v762, %v761
        %v768 = vsel %vm413, %v746, 0
        %770 = vmatpush.bf16.msra.mxu0 0
        %771 = vmatpush.bf16.msra.mxu0 0
        %772 = vmatpush.bf16.msra.mxu0 0
        %773 = vmatpush.bf16.msra.mxu0 0
        %774 = vmatpush.bf16.msra.mxu0 0
        %775 = vmatpush.bf16.msra.mxu0 0
        %776 = vmatpush.bf16.msra.mxu0 %v764
        %777 = vmatpush.bf16.msra.mxu0 %v763
        %778 = vmatmul.bf16.gmra.mxu0 %v768
        %v779 = vpop.f32.mrf.mxu0
        %v780 = vadd.f32 %v753, %v779
        %v781 = vpop.f32.mrf.mxu0
        %782 = vdwg.mxu0
        %v783 = vadd.f32 %v410, %v780
        %v784 = vld [vmem:[%s3] sm:$0x1]
        %v785 = vld [vmem:[%s4] sm:$0x1]
        %v786 = vsel %vm413, %v783, 0.0
        %787 = vadd.xlane.f32.xlu0 %v786
        %v788 = vpop.xlane.xlu0 %787
        %v789 = vmul.f32 %v788, %v423
        %v790 = vsub.f32 %v783, %v789
        %v791 = vmul.f32 %v790, %v790
        %v792 = vsel %vm413, %v791, 0.0
        %793 = vadd.xlane.f32.xlu0 %v792
        %v794 = vpop.xlane.xlu0 %793
        %v795 = vmul.f32 %v794, %v423
        %v796 = vadd.f32 %v795, 1e-05
        %v797 = vrsqrt.pop %v796
        %v798 = vmul.f32 %v797, %v796
        %v799 = vmul.f32 %v798, %v797
        %v800 = vmul.f32 0.5, %v799
        %v801 = vsub.f32 1.5, %v800
        %v802 = vmul.f32 %v797, %v801
        %vm803 = vweird.f32 %v796
        %vm804 = vweird.f32 %v797
        %vm805 = vmor %vm803, %vm804
        %v806 = vsel %vm805, %v797, %v802
        %v807 = vmul.f32 %v790, %v806
        %v809 = vperm.slane %v784, 0
        %v811 = vmul.f32 %v807, %v809
        %v813 = vperm.slane %v785, 0
        %v815 = vadd.f32 %v811, %v813
        %v816 = vpack.c.bf16 %v815, %v815
        %v817 = vld [vmem:[%s8] sm:$0xf]
        %v818 = vld [vmem:[%s8 + $0x4] sm:$0xf]
        %v819 = vld [vmem:[%s8 + $0x8] sm:$0xf]
        %v820 = vld [vmem:[%s8 + $0xc] sm:$0xf]
        %v821 = vld [vmem:[%s9] sm:$0x1]
        %v823 = vperm.slane %v821, 0
        %v829 = vunpack.c.l.b16 %v817
        %v830 = vunpack.c.l.b16 %v818
        %v831 = vunpack.c.l.b16 %v819
        %v832 = vunpack.c.l.b16 %v820
        %v833 = vpack.c.b16 %v830, %v829
        %v834 = vpack.c.b16 %v832, %v831
        %v838 = vsel %vm413, %v816, 0
        %840 = vmatpush.bf16.msra.mxu0 0
        %841 = vmatpush.bf16.msra.mxu0 0
        %842 = vmatpush.bf16.msra.mxu0 0
        %843 = vmatpush.bf16.msra.mxu0 0
        %844 = vmatpush.bf16.msra.mxu0 0
        %845 = vmatpush.bf16.msra.mxu0 0
        %846 = vmatpush.bf16.msra.mxu0 %v834
        %847 = vmatpush.bf16.msra.mxu0 %v833
        %848 = vmatmul.bf16.gmra.mxu0 %v838
        %v849 = vpop.f32.mrf.mxu0
        %v850 = vadd.f32 %v823, %v849
        %v851 = vpop.f32.mrf.mxu0
        %852 = vdwg.mxu0
        %v853 = vmax.f32 %v850, 0.0
        %v854 = vpack.c.bf16 %v853, %v853
        %v855 = vld [vmem:[%s10] sm:$0xf]
        %v856 = vld [vmem:[%s10 + $0x4] sm:$0xf]
        %v857 = vld [vmem:[%s10 + $0x8] sm:$0xf]
        %v858 = vld [vmem:[%s10 + $0xc] sm:$0xf]
        %v859 = vld [vmem:[%s10 + $0x10] sm:$0xf]
        %v860 = vld [vmem:[%s10 + $0x14] sm:$0xf]
        %v861 = vld [vmem:[%s10 + $0x18] sm:$0xf]
        %v862 = vld [vmem:[%s10 + $0x1c] sm:$0xf]
        %v863 = vld [vmem:[%s10 + $0x20] sm:$0xf]
        %v864 = vld [vmem:[%s10 + $0x24] sm:$0xf]
        %v865 = vld [vmem:[%s10 + $0x28] sm:$0xf]
        %v866 = vld [vmem:[%s10 + $0x2c] sm:$0xf]
        %v867 = vld [vmem:[%s10 + $0x30] sm:$0xf]
        %v868 = vld [vmem:[%s10 + $0x34] sm:$0xf]
        %v869 = vld [vmem:[%s10 + $0x38] sm:$0xf]
        %v870 = vld [vmem:[%s10 + $0x3c] sm:$0xf]
        %v871 = vld [vmem:[%s11] sm:$0x1]
        %v873 = vperm.slane %v871, 0
        %v891 = vunpack.c.l.b16 %v855
        %v892 = vunpack.c.l.b16 %v856
        %v893 = vunpack.c.l.b16 %v857
        %v894 = vunpack.c.l.b16 %v858
        %v895 = vunpack.c.l.b16 %v859
        %v896 = vunpack.c.l.b16 %v860
        %v897 = vunpack.c.l.b16 %v861
        %v898 = vunpack.c.l.b16 %v862
        %v899 = vunpack.c.l.b16 %v863
        %v900 = vunpack.c.l.b16 %v864
        %v901 = vunpack.c.l.b16 %v865
        %v902 = vunpack.c.l.b16 %v866
        %v903 = vunpack.c.l.b16 %v867
        %v904 = vunpack.c.l.b16 %v868
        %v905 = vunpack.c.l.b16 %v869
        %v906 = vunpack.c.l.b16 %v870
        %v907 = vpack.c.b16 %v892, %v891
        %v908 = vpack.c.b16 %v894, %v893
        %v909 = vpack.c.b16 %v896, %v895
        %v910 = vpack.c.b16 %v898, %v897
        %v911 = vpack.c.b16 %v900, %v899
        %v912 = vpack.c.b16 %v902, %v901
        %v913 = vpack.c.b16 %v904, %v903
        %v914 = vpack.c.b16 %v906, %v905
        %923 = vmatpush.bf16.msra.mxu0 %v914
        %924 = vmatpush.bf16.msra.mxu0 %v913
        %925 = vmatpush.bf16.msra.mxu0 %v912
        %926 = vmatpush.bf16.msra.mxu0 %v911
        %927 = vmatpush.bf16.msra.mxu0 %v910
        %928 = vmatpush.bf16.msra.mxu0 %v909
        %929 = vmatpush.bf16.msra.mxu0 %v908
        %930 = vmatpush.bf16.msra.mxu0 %v907
        %931 = vmatmul.bf16.gmra.mxu0 %v854
        %v932 = vpop.f32.mrf.mxu0
        %v933 = vadd.f32 %v873, %v932
        %v934 = vpop.f32.mrf.mxu0
        %935 = vdwg.mxu0
        %v936 = vadd.f32 %v783, %v933
        %937 = vst.msk [vmem:[%s404] sm:$0xff] %vm413, %v936
        %s938 = sand.u32 %s291, 1
        %s939 = scalar_lea.sflag [#allocation4], %s938
        %s940 = sand.u32 %s291, 1
        %s941 = smul.addr %s940, 8
        %s942 = scalar_lea.vmem [#allocation3], %s941
        // Predicated region
        $region69: #{tpu_custom_call.1} parent=67 // pred_check
          %p943 = pneg %p301
        $region70: #{tpu_custom_call.1} parent=67 // pred_check_branch
          %945 = sbr.rel (%p943) target = $region72
        $region71: #{tpu_custom_call.1} parent=67 // pred_region
          %947 = vsyncadd %s939, 0
          %s948 = smul.addr %s26, 8
          %s949 = scalar_lea.hbm %s12, %s948
          %s951 = sshll.u32 %s942, 4
          %s952 = int_to_ptr.vmem [resolvable:$true] %s951
          %s953 = sshll.u32 %s949, 4
          %s954 = int_to_ptr.hbm [resolvable:$true] %s953
          %956 = dma.vmem_to_hbm [thread:$0]  %s952, 128, %s954, %s939
        $region72: #{tpu_custom_call.1} parent=67 // pred_fallthru
          _
      $region68: #{tpu_custom_call.1} parent=5 // pred_fallthru
        _
      %p957 = scmp.le.s32.totalorder 2, %s21
      // Predicated region
      $region73: #{tpu_custom_call.1} parent=5 // pred_check
        %p958 = pneg %p957
      $region74: #{tpu_custom_call.1} parent=5 // pred_check_branch
        %960 = sbr.rel (%p958) target = $region76
      $region75: #{tpu_custom_call.1} parent=5 // pred_region
        %s961 = ssub.s32 %s21, 2
        // Predicated region
        $region77: #{tpu_custom_call.1} parent=75 // pred_check
          %p962 = pneg %p307
        $region78: #{tpu_custom_call.1} parent=75 // pred_check_branch
          %964 = sbr.rel (%p962) target = $region80
        $region79: #{tpu_custom_call.1} parent=75 // pred_region
          %s965 = sand.u32 %s292, 1
          %s966 = scalar_lea.sflag [#allocation4], %s965
          %s967 = sand.u32 %s292, 1
          %s968 = smul.addr %s967, 8
          %s969 = scalar_lea.vmem [#allocation3], %s968
          %971 = dma.done %s966, 128
        $region80: #{tpu_custom_call.1} parent=75 // pred_fallthru
          _
      $region76: #{tpu_custom_call.1} parent=5 // pred_fallthru
        _
    $region6: #{tpu_custom_call.1} parent=1 // loop_footer
      %s25 = sadd.s32 1, %s21
    $region7: #{tpu_custom_call.1} parent=1 // loop_footer_branch
      %20 = sbr.rel target = $region3
    $region8: #{tpu_custom_call.1} parent=1 // loop_exit
      _
    %972 = vsyncpa [#allocation4], 1
    %s973 = scalar_lea.sflag [#allocation4], 1
    %974 = vsyncpa %s973, 1

</llo_original>
